<compile_context>
chip_gen: v7x
topology: tpu7x:2x2x1
jax: 0.10.0
libtpu: 0.0.40
codegen_flags: <defaults>
</compile_context>

<pallas_src>
import functools
import math

import jax
import jax.numpy as jnp
from jax import lax
from jax.experimental import pallas as pl
from jax.experimental.pallas import tpu as pltpu

_LANES = 128
_SUBLANES = 8
_TARGET_BLOCKS = 4  # expose >=4 blocks when R allows (pipeline overlap + 2 TCs on v7x)


def _round_up(a, b):
    return (a + b - 1) // b * b


def _round_down(a, b):
    return a // b * b


def _vmem_capacity_bytes():
    try:
        return int(pltpu.get_tpu_info().vmem_capacity_bytes)
    except Exception:
        # Unknown chip / interpret mode: assume the smallest (v7x-class) VMEM.
        return 64 * 1024 * 1024


def _tile_plan(n, r, vmem_cap):
    """Pick tile_rows (multiple of 8) and a generation-aware vmem_limit_bytes."""
    if vmem_cap <= 64 * 1024 * 1024:          # v7x: 64 MiB physical VMEM
        input_budget, vmem_limit = 16 << 20, 48 << 20
    else:                                      # v5e / v6e: 128 MiB physical VMEM
        input_budget, vmem_limit = 32 << 20, 64 << 20
    # Double-buffered f32 x + f32 t bytes per 128-lane row (across all N samples).
    bytes_per_row = n * _LANES * (4 + 4) * 2
    budget_rows = max(_SUBLANES, _round_down(max(1, input_budget // bytes_per_row), _SUBLANES))
    # Aim for >= _TARGET_BLOCKS grid steps when R allows it.
    target_rows = _round_up(pl.cdiv(r, _TARGET_BLOCKS), _SUBLANES)
    tile_rows = max(_SUBLANES, min(budget_rows, target_rows, _round_up(r, _SUBLANES)))
    return tile_rows, vmem_limit


def _bce_dice_kernel(x_ref, t_ref, o_ref, *, d, tile_rows, needs_mask):
    """x_ref/t_ref: (N, tile_rows, 128) f32 block.  o_ref: (1, 4, N, 128) f32.

    Output slots (per-sample, lane-wise partials): 0 = sum(bce_elem),
    1 = sum(sigmoid*t), 2 = sum(sigmoid), 3 = sum(t).  Lane reduce and the
    scalar epilogue happen in plain JAX outside the kernel.
    """
    b = pl.program_id(0)
    x = x_ref[...].astype(jnp.float32)
    t = t_ref[...].astype(jnp.float32)

    def _rsum(v):
        # (N, tile_rows, 128) -> (N, 128): pure-VALU vreg adds over groups of 8
        # sublane rows, then a single cross-sublane (XLU) reduce.
        v = v.reshape(v.shape[0], tile_rows // _SUBLANES, _SUBLANES, _LANES)
        return jnp.sum(jnp.sum(v, axis=1), axis=1)

    def _compute_and_store(valid):
        # 2 EUP ops / element: tanh gives both sigmoid(x) and the stable BCE
        # log-term: log1p(exp(-|x|)) == -log(sigmoid(|x|)).
        s_abs = 0.5 * (1.0 + jnp.tanh(0.5 * jnp.abs(x)))       # sigmoid(|x|)
        s = jnp.where(x >= 0.0, s_abs, 1.0 - s_abs)            # sigmoid(x)
        bce = jnp.maximum(x, 0.0) - x * t - jnp.log(s_abs)
        tt = t
        if valid is not None:
            bce = jnp.where(valid, bce, 0.0)
            s = jnp.where(valid, s, 0.0)
            tt = jnp.where(valid, t, 0.0)
        o_ref[0, 0, :, :] = _rsum(bce)
        o_ref[0, 1, :, :] = _rsum(s * tt)
        o_ref[0, 2, :, :] = _rsum(s)
        o_ref[0, 3, :, :] = _rsum(tt)

    if not needs_mask:
        # Statically exactly tiled: no mask work anywhere.
        _compute_and_store(None)
    else:
        nb = pl.num_programs(0)

        @pl.when(b < nb - 1)          # interior blocks are fully valid
        def _():
            _compute_and_store(None)

        @pl.when(b == nb - 1)         # only the last block can hold a ragged tail
        def _():
            rows = lax.broadcasted_iota(jnp.int32, (tile_rows, _LANES), 0)
            lanes = lax.broadcasted_iota(jnp.int32, (tile_rows, _LANES), 1)
            flat = (b * tile_rows + rows) * _LANES + lanes
            _compute_and_store((flat < d)[None, :, :])


def bce_dice_loss(logits, target, *, smooth=1e-05):
    """BCEDiceLoss.forward(input, target) for N×... tensors (e.g. NCHW)."""
    n = logits.shape[0]
    d = math.prod(logits.shape[1:])

    x = logits.reshape(n, d).astype(jnp.float32)
    t = target.reshape(n, d).astype(jnp.float32)

    r = pl.cdiv(d, _LANES)
    if d % _LANES:
        # Rare fallback: the lane-dense (N, R, 128) reshape needs D % 128 == 0.
        # Pads < 128 elems/sample; padded values are masked out in-kernel.
        pad = r * _LANES - d
        x = jnp.pad(x, ((0, 0), (0, pad)))
        t = jnp.pad(t, ((0, 0), (0, pad)))
    x = x.reshape(n, r, _LANES)
    t = t.reshape(n, r, _LANES)

    tile_rows, vmem_limit = _tile_plan(n, r, _vmem_capacity_bytes())
    nb = pl.cdiv(r, tile_rows)
    # Mask only needed if the grid's last block is not completely filled with
    # real elements (partial block and/or D % 128 padding).
    needs_mask = (d != nb * tile_rows * _LANES)

    kernel = functools.partial(
        _bce_dice_kernel, d=d, tile_rows=tile_rows, needs_mask=needs_mask
    )

    out_elems = nb * 4 * n * _LANES
    cost = pl.CostEstimate(
        flops=12 * n * r * _LANES,
        transcendentals=2 * n * r * _LANES,
        bytes_accessed=int(x.size * x.dtype.itemsize
                           + t.size * t.dtype.itemsize
                           + out_elems * 4),
    )

    partials = pl.pallas_call(
        kernel,
        out_shape=jax.ShapeDtypeStruct((nb, 4, n, _LANES), jnp.float32),
        grid_spec=pltpu.PrefetchScalarGridSpec(
            num_scalar_prefetch=0,
            grid=(nb,),
            in_specs=[
                pl.BlockSpec((n, tile_rows, _LANES), lambda b: (0, b, 0)),
                pl.BlockSpec((n, tile_rows, _LANES), lambda b: (0, b, 0)),
            ],
            out_specs=pl.BlockSpec((1, 4, n, _LANES), lambda b: (b, 0, 0, 0)),
        ),
        compiler_params=pltpu.CompilerParams(
            dimension_semantics=("parallel",),
            vmem_limit_bytes=vmem_limit,
        ),
        cost_estimate=cost,
    )(x, t)

    # Tiny scalar epilogue in plain JAX (block/lane reduce of the partials).
    sums = jnp.sum(partials, axis=(0, 3))              # (4, n)
    bce = jnp.sum(sums[0]) / (n * d)                   # mean over all elements
    dice_per = (2.0 * sums[1] + smooth) / (sums[2] + sums[3] + smooth)
    dice = 1.0 - jnp.sum(dice_per) / n
    return 0.5 * bce + dice


def _reference(input_nchw, target_nchw):
    # Pure-JAX reference mirroring the PyTorch module.
    n = input_nchw.shape[0]
    x = input_nchw.reshape(n, -1).astype(jnp.float32)
    t = target_nchw.reshape(n, -1).astype(jnp.float32)
    bce_elem = jnp.maximum(x, 0.0) - x * t + jnp.log1p(jnp.exp(-jnp.abs(x)))
    bce = jnp.mean(bce_elem)
    smooth = 1e-05
    s = jax.nn.sigmoid(x)
    dice = (2.0 * jnp.sum(s * t, axis=1) + smooth) / (
        jnp.sum(s, axis=1) + jnp.sum(t, axis=1) + smooth
    )
    dice = 1.0 - jnp.sum(dice) / n
    return 0.5 * bce + dice


if __name__ == "__main__":
    key = jax.random.PRNGKey(0)
    k1, k2, k3, k4, k5, k6 = jax.random.split(key, 6)

    # Small NCHW shape per the module spec: (2, 4, 16, 16) -> exactly one block.
    logits = jax.random.normal(k1, (2, 4, 16, 16), dtype=jnp.float32)
    target = (jax.random.uniform(k2, (2, 4, 16, 16)) > 0.5).astype(jnp.float32)
    loss = jax.block_until_ready(bce_dice_loss(logits, target))
    ref = _reference(logits, target)
    assert jnp.allclose(loss, ref, atol=1e-4, rtol=1e-4), (loss, ref)

    # Larger shape: multi-block "parallel" grid, exactly tiled (no mask path,
    # no wrapper-side padding or casting).
    logits2 = jax.random.normal(k3, (2, 4, 192, 160), dtype=jnp.float32)
    target2 = (jax.random.uniform(k4, (2, 4, 192, 160)) > 0.5).astype(jnp.float32)
    loss2 = jax.block_until_ready(bce_dice_loss(logits2, target2))
    ref2 = _reference(logits2, target2)
    assert jnp.allclose(loss2, ref2, atol=1e-4, rtol=1e-4), (loss2, ref2)

    # Ragged shape: D not a multiple of 128 or of the tile -> exercises the
    # in-kernel tail mask on the last (partial) block.
    logits3 = jax.random.normal(k5, (2, 3, 50, 33), dtype=jnp.float32)
    target3 = (jax.random.uniform(k6, (2, 3, 50, 33)) > 0.5).astype(jnp.float32)
    loss3 = jax.block_until_ready(bce_dice_loss(logits3, target3))
    ref3 = _reference(logits3, target3)
    assert jnp.allclose(loss3, ref3, atol=1e-4, rtol=1e-4), (loss3, ref3)

    print("KERNEL_OK")
</pallas_src>

<mosaic_0001>
module attributes {stable_mosaic.version = 11 : i64} {
  func.func @_bce_dice_kernel(%arg0: i32, %arg1: memref<2x8x128xf32, #tpu.memory_space<vmem>>, %arg2: memref<2x8x128xf32, #tpu.memory_space<vmem>>, %arg3: memref<1x4x2x128xf32, #tpu.memory_space<vmem>>) attributes {dimension_semantics = [#tpu.dimension_semantics<parallel>], iteration_bounds = array<i64: 1>, scalar_prefetch = 0 : i64, scratch_operands = 0 : i64, tpu.core_type = #tpu.core_type<tc>, window_params = [{transform_indices = @transform_0, window_bounds = array<i64: 2, 8, 128>}, {transform_indices = @transform_1, window_bounds = array<i64: 2, 8, 128>}, {transform_indices = @transform_2, window_bounds = array<i64: 1, 4, 2, 128>}]} {
    %c0 = arith.constant 0 : index
    %c0_0 = arith.constant 0 : index
    %c0_1 = arith.constant 0 : index
    %0 = vector.load %arg1[%c0, %c0_0, %c0_1] : memref<2x8x128xf32, #tpu.memory_space<vmem>>, vector<2x8x128xf32>
    %c0_2 = arith.constant 0 : index
    %c0_3 = arith.constant 0 : index
    %c0_4 = arith.constant 0 : index
    %1 = vector.load %arg2[%c0_2, %c0_3, %c0_4] : memref<2x8x128xf32, #tpu.memory_space<vmem>>, vector<2x8x128xf32>
    %2 = math.absf %0 : vector<2x8x128xf32>
    %cst = arith.constant 5.000000e-01 : f32
    %3 = vector.broadcast %cst : f32 to vector<2x8x128xf32>
    %4 = arith.mulf %3, %2 : vector<2x8x128xf32>
    %5 = math.tanh %4 : vector<2x8x128xf32>
    %cst_5 = arith.constant 1.000000e+00 : f32
    %6 = vector.broadcast %cst_5 : f32 to vector<2x8x128xf32>
    %7 = arith.addf %6, %5 : vector<2x8x128xf32>
    %cst_6 = arith.constant 5.000000e-01 : f32
    %8 = vector.broadcast %cst_6 : f32 to vector<2x8x128xf32>
    %9 = arith.mulf %8, %7 : vector<2x8x128xf32>
    %cst_7 = arith.constant 0.000000e+00 : f32
    %10 = vector.broadcast %cst_7 : f32 to vector<2x8x128xf32>
    %11 = arith.cmpf oge, %0, %10 : vector<2x8x128xf32>
    %cst_8 = arith.constant 1.000000e+00 : f32
    %12 = vector.broadcast %cst_8 : f32 to vector<2x8x128xf32>
    %13 = arith.subf %12, %9 : vector<2x8x128xf32>
    %14 = arith.select %11, %9, %13 : vector<2x8x128xi1>, vector<2x8x128xf32>
    %cst_9 = arith.constant 0.000000e+00 : f32
    %15 = vector.broadcast %cst_9 : f32 to vector<2x8x128xf32>
    %16 = arith.maximumf %0, %15 : vector<2x8x128xf32>
    %17 = arith.mulf %0, %1 : vector<2x8x128xf32>
    %18 = arith.subf %16, %17 : vector<2x8x128xf32>
    %19 = math.log %9 : vector<2x8x128xf32>
    %20 = arith.subf %18, %19 : vector<2x8x128xf32>
    %21 = vector.shape_cast %20 : vector<2x8x128xf32> to vector<2x1x8x128xf32>
    %cst_10 = arith.constant dense<0.000000e+00> : vector<2x8x128xf32>
    %22 = vector.multi_reduction <add>, %21, %cst_10 [1] : vector<2x1x8x128xf32> to vector<2x8x128xf32>
    %cst_11 = arith.constant dense<0.000000e+00> : vector<2x128xf32>
    %23 = vector.multi_reduction <add>, %22, %cst_11 [1] : vector<2x8x128xf32> to vector<2x128xf32>
    %c0_12 = arith.constant 0 : index
    %c0_13 = arith.constant 0 : index
    %c0_14 = arith.constant 0 : index
    %c0_15 = arith.constant 0 : index
    %24 = vector.load %arg3[%c0_12, %c0_13, %c0_14, %c0_15] : memref<1x4x2x128xf32, #tpu.memory_space<vmem>>, vector<1x1x2x128xf32>
    %25 = vector.shape_cast %24 : vector<1x1x2x128xf32> to vector<2x128xf32>
    %26 = vector.shape_cast %23 : vector<2x128xf32> to vector<1x1x2x128xf32>
    tpu.vector_store %arg3[%c0_12, %c0_13, %c0_14, %c0_15], %26 {strides = array<i32>} : memref<1x4x2x128xf32, #tpu.memory_space<vmem>>, vector<1x1x2x128xf32>,
    %27 = arith.mulf %14, %1 : vector<2x8x128xf32>
    %28 = vector.shape_cast %27 : vector<2x8x128xf32> to vector<2x1x8x128xf32>
    %cst_16 = arith.constant dense<0.000000e+00> : vector<2x8x128xf32>
    %29 = vector.multi_reduction <add>, %28, %cst_16 [1] : vector<2x1x8x128xf32> to vector<2x8x128xf32>
    %cst_17 = arith.constant dense<0.000000e+00> : vector<2x128xf32>
    %30 = vector.multi_reduction <add>, %29, %cst_17 [1] : vector<2x8x128xf32> to vector<2x128xf32>
    %c0_18 = arith.constant 0 : index
    %c1 = arith.constant 1 : index
    %c0_19 = arith.constant 0 : index
    %c0_20 = arith.constant 0 : index
    %31 = vector.load %arg3[%c0_18, %c1, %c0_19, %c0_20] : memref<1x4x2x128xf32, #tpu.memory_space<vmem>>, vector<1x1x2x128xf32>
    %32 = vector.shape_cast %31 : vector<1x1x2x128xf32> to vector<2x128xf32>
    %33 = vector.shape_cast %30 : vector<2x128xf32> to vector<1x1x2x128xf32>
    tpu.vector_store %arg3[%c0_18, %c1, %c0_19, %c0_20], %33 {strides = array<i32>} : memref<1x4x2x128xf32, #tpu.memory_space<vmem>>, vector<1x1x2x128xf32>,
    %34 = vector.shape_cast %14 : vector<2x8x128xf32> to vector<2x1x8x128xf32>
    %cst_21 = arith.constant dense<0.000000e+00> : vector<2x8x128xf32>
    %35 = vector.multi_reduction <add>, %34, %cst_21 [1] : vector<2x1x8x128xf32> to vector<2x8x128xf32>
    %cst_22 = arith.constant dense<0.000000e+00> : vector<2x128xf32>
    %36 = vector.multi_reduction <add>, %35, %cst_22 [1] : vector<2x8x128xf32> to vector<2x128xf32>
    %c0_23 = arith.constant 0 : index
    %c2 = arith.constant 2 : index
    %c0_24 = arith.constant 0 : index
    %c0_25 = arith.constant 0 : index
    %37 = vector.load %arg3[%c0_23, %c2, %c0_24, %c0_25] : memref<1x4x2x128xf32, #tpu.memory_space<vmem>>, vector<1x1x2x128xf32>
    %38 = vector.shape_cast %37 : vector<1x1x2x128xf32> to vector<2x128xf32>
    %39 = vector.shape_cast %36 : vector<2x128xf32> to vector<1x1x2x128xf32>
    tpu.vector_store %arg3[%c0_23, %c2, %c0_24, %c0_25], %39 {strides = array<i32>} : memref<1x4x2x128xf32, #tpu.memory_space<vmem>>, vector<1x1x2x128xf32>,
    %40 = vector.shape_cast %1 : vector<2x8x128xf32> to vector<2x1x8x128xf32>
    %cst_26 = arith.constant dense<0.000000e+00> : vector<2x8x128xf32>
    %41 = vector.multi_reduction <add>, %40, %cst_26 [1] : vector<2x1x8x128xf32> to vector<2x8x128xf32>
    %cst_27 = arith.constant dense<0.000000e+00> : vector<2x128xf32>
    %42 = vector.multi_reduction <add>, %41, %cst_27 [1] : vector<2x8x128xf32> to vector<2x128xf32>
    %c0_28 = arith.constant 0 : index
    %c3 = arith.constant 3 : index
    %c0_29 = arith.constant 0 : index
    %c0_30 = arith.constant 0 : index
    %43 = vector.load %arg3[%c0_28, %c3, %c0_29, %c0_30] : memref<1x4x2x128xf32, #tpu.memory_space<vmem>>, vector<1x1x2x128xf32>
    %44 = vector.shape_cast %43 : vector<1x1x2x128xf32> to vector<2x128xf32>
    %45 = vector.shape_cast %42 : vector<2x128xf32> to vector<1x1x2x128xf32>
    tpu.vector_store %arg3[%c0_28, %c3, %c0_29, %c0_30], %45 {strides = array<i32>} : memref<1x4x2x128xf32, #tpu.memory_space<vmem>>, vector<1x1x2x128xf32>,
    return
  }
  func.func @transform_0(%arg0: i32) -> (i32, i32, i32) {
    %c0_i32 = arith.constant 0 : i32
    %c0_i32_0 = arith.constant 0 : i32
    %c0_i32_1 = arith.constant 0 : i32
    return %c0_i32, %arg0, %c0_i32_0 : i32, i32, i32
  }
  func.func @transform_1(%arg0: i32) -> (i32, i32, i32) {
    %c0_i32 = arith.constant 0 : i32
    %c0_i32_0 = arith.constant 0 : i32
    %c0_i32_1 = arith.constant 0 : i32
    return %c0_i32, %arg0, %c0_i32_0 : i32, i32, i32
  }
  func.func @transform_2(%arg0: i32) -> (i32, i32, i32, i32) {
    %c0_i32 = arith.constant 0 : i32
    %c0_i32_0 = arith.constant 0 : i32
    %c0_i32_1 = arith.constant 0 : i32
    %c0_i32_2 = arith.constant 0 : i32
    return %arg0, %c0_i32, %c0_i32_0, %c0_i32_1 : i32, i32, i32, i32
  }
}

</mosaic_0001>

<llo_original>
// kernel: tpu_custom_call.1
$region0: #{tpu_custom_call.1}
  #allocation0 [shape = 'u32[]', space=smem, size = 0x4, offset = 0x4, fixed_abs, tag = 'smem constant byte address 0x4 - core index']
  #allocation1 [shape = 'u32[144,128]{1,0:T(1,128)}', space=vmem, size = 0x12000, scoped, tag = 'internal scratch']
  %s0 = inlined_call_operand.hbm [shape: f32[2,8,128], index: 0, kind: input, shape index: {}]
  %s1 = inlined_call_operand.hbm [shape: f32[2,8,128], index: 1, kind: input, shape index: {}]
  %s2 = inlined_call_operand.hbm [shape: f32[1,4,2,128], index: 2, kind: output, shape index: {}]
  %s3 = sld [smem:[#allocation0]]
  $region26: #{tpu_custom_call.1} parent=0
    _
  %s5 = ssub.s32 1, %s3
  %s6 = scalar_select 0, %s5, %s3
  $region1: #{tpu_custom_call.1} parent=0
    #allocation2 [shape = 'u8[8192]{0}', space=vmem, size = 0x2000, scoped, tag = 'input window, operand 0, single buffered']
    #allocation3 [shape = 's32[1]{0}', space=sflag, size = 0x4, scoped, tag = 'scoped memory for tpu_custom_call.1']
    #allocation4 [shape = 's32[1]{0}', space=sflag, size = 0x4, scoped, tag = 'scoped memory for tpu_custom_call.1']
    #allocation5 [shape = 'u8[8192]{0}', space=vmem, size = 0x2000, scoped, tag = 'input window, operand 1, single buffered']
    #allocation6 [shape = 's32[1]{0}', space=sflag, size = 0x4, scoped, tag = 'scoped memory for tpu_custom_call.1']
    #allocation7 [shape = 'u8[4096]{0}', space=vmem, size = 0x1000, scoped, tag = 'output window, operand 0, single buffered']
    %7 = vsyncpa [#allocation3], 0
    %8 = vsyncpa [#allocation6], 0
    %9 = vsyncpa [#allocation4], 0
    // Predicated region
    $region2: #{tpu_custom_call.1} parent=1 // pred_check
      _
    $region3: #{tpu_custom_call.1} parent=1 // pred_check_branch
      %11 = sbr.rel (0) target = $region5
    $region4: #{tpu_custom_call.1} parent=1 // pred_region
      %s13 = ssub.s32 256, 256
      %14 = vsyncadd [#allocation3], %s13
      %s15 = sshll.u32 [#allocation2], 4
      %s16 = int_to_ptr.vmem [resolvable:$true] %s15
      %21 = dma.hbm_to_vmem [thread:$0]  %s0, 256, %s16, [#allocation3], 128, 128, 8
    $region5: #{tpu_custom_call.1} parent=1 // pred_fallthru
      _
    // Predicated region
    $region6: #{tpu_custom_call.1} parent=1 // pred_check
      _
    $region7: #{tpu_custom_call.1} parent=1 // pred_check_branch
      %23 = sbr.rel (0) target = $region9
    $region8: #{tpu_custom_call.1} parent=1 // pred_region
      %s25 = ssub.s32 256, 256
      %26 = vsyncadd [#allocation6], %s25
      %s27 = sshll.u32 [#allocation5], 4
      %s28 = int_to_ptr.vmem [resolvable:$true] %s27
      %33 = dma.hbm_to_vmem [thread:$0]  %s1, 256, %s28, [#allocation6], 128, 128, 8
    $region9: #{tpu_custom_call.1} parent=1 // pred_fallthru
      _
    // Predicated region
    $region10: #{tpu_custom_call.1} parent=1 // pred_check
      _
    $region11: #{tpu_custom_call.1} parent=1 // pred_check_branch
      %35 = sbr.rel (0) target = $region13
    $region12: #{tpu_custom_call.1} parent=1 // pred_region
      %36 = dma.done [#allocation3], 256
    $region13: #{tpu_custom_call.1} parent=1 // pred_fallthru
      _
    // Predicated region
    $region14: #{tpu_custom_call.1} parent=1 // pred_check
      _
    $region15: #{tpu_custom_call.1} parent=1 // pred_check_branch
      %38 = sbr.rel (0) target = $region17
    $region16: #{tpu_custom_call.1} parent=1 // pred_region
      %39 = dma.done [#allocation6], 256
    $region17: #{tpu_custom_call.1} parent=1 // pred_fallthru
      _
    %v40 = vld [vmem:[#allocation2] sm:$0xff]
    %v41 = vld [vmem:[#allocation2 + $0x8] sm:$0xff]
    %v42 = vld [vmem:[#allocation5] sm:$0xff]
    %v43 = vld [vmem:[#allocation5 + $0x8] sm:$0xff]
    %v44 = vand.u32 2147483647, %v40
    %v45 = vand.u32 2147483647, %v41
    %v46 = vmul.f32 %v44, 0.5
    %v47 = vmul.f32 %v45, 0.5
    %v48 = vtanh.pop %v46
    %v49 = vtanh.pop %v47
    %v50 = vadd.f32 %v48, 1.0
    %v51 = vadd.f32 %v49, 1.0
    %v52 = vmul.f32 %v50, 0.5
    %v53 = vmul.f32 %v51, 0.5
    %vm54 = vcmp.ge.f32.partialorder %v40, 0.0
    %vm55 = vcmp.ge.f32.partialorder %v41, 0.0
    %v56 = vsub.f32 1.0, %v52
    %v57 = vsub.f32 1.0, %v53
    %v58 = vsel %vm54, %v52, %v56
    %v59 = vsel %vm55, %v53, %v57
    %v60 = vmax.f32 %v40, 0.0
    %v61 = vmax.f32 %v41, 0.0
    %v62 = vmul.f32 %v40, %v42
    %v63 = vmul.f32 %v41, %v43
    %v64 = vsub.f32 %v60, %v62
    %v65 = vsub.f32 %v61, %v63
    %v66 = vlog2.pop %v52
    %v67 = vmul.f32 %v66, 0.6931472
    %v68 = vlog2.pop %v53
    %v69 = vmul.f32 %v68, 0.6931472
    %v70 = vsub.f32 %v64, %v67
    %v71 = vsub.f32 %v65, %v69
    %v72 = vadd.f32 %v70, 0.0
    %v73 = vadd.f32 %v71, 0.0
    %v74 = vrot.slane %v72, 4
    %v75 = vadd.f32 %v72, %v74
    %v76 = vrot.slane %v75, 2
    %v77 = vadd.f32 %v75, %v76
    %v78 = vrot.slane %v77, 1
    %v79 = vadd.f32 %v77, %v78
    %v80 = vrot.slane %v73, 4
    %v81 = vadd.f32 %v73, %v80
    %v82 = vrot.slane %v81, 2
    %v83 = vadd.f32 %v81, %v82
    %v84 = vrot.slane %v83, 1
    %v85 = vadd.f32 %v83, %v84
    %vm88 = vcmask 1041409
    %v89 = vsel %vm88, %v85, %v79
    %91 = vst [vmem:[#allocation7] sm:$0x3] %v89
    %v92 = vmul.f32 %v58, %v42
    %v93 = vmul.f32 %v59, %v43
    %v94 = vadd.f32 %v92, 0.0
    %v95 = vadd.f32 %v93, 0.0
    %v96 = vrot.slane %v94, 4
    %v97 = vadd.f32 %v94, %v96
    %v98 = vrot.slane %v97, 2
    %v99 = vadd.f32 %v97, %v98
    %v100 = vrot.slane %v99, 1
    %v101 = vadd.f32 %v99, %v100
    %v102 = vrot.slane %v95, 4
    %v103 = vadd.f32 %v95, %v102
    %v104 = vrot.slane %v103, 2
    %v105 = vadd.f32 %v103, %v104
    %v106 = vrot.slane %v105, 1
    %v107 = vadd.f32 %v105, %v106
    %v110 = vsel %vm88, %v107, %v101
    %s112 = scalar_lea.vmem [#allocation7], 2
    %113 = vst [vmem:[%s112] sm:$0x3] %v110
    %v114 = vadd.f32 %v58, 0.0
    %v115 = vadd.f32 %v59, 0.0
    %v116 = vrot.slane %v114, 4
    %v117 = vadd.f32 %v114, %v116
    %v118 = vrot.slane %v117, 2
    %v119 = vadd.f32 %v117, %v118
    %v120 = vrot.slane %v119, 1
    %v121 = vadd.f32 %v119, %v120
    %v122 = vrot.slane %v115, 4
    %v123 = vadd.f32 %v115, %v122
    %v124 = vrot.slane %v123, 2
    %v125 = vadd.f32 %v123, %v124
    %v126 = vrot.slane %v125, 1
    %v127 = vadd.f32 %v125, %v126
    %v130 = vsel %vm88, %v127, %v121
    %s132 = scalar_lea.vmem [#allocation7], 4
    %133 = vst [vmem:[%s132] sm:$0x3] %v130
    %v134 = vadd.f32 %v42, 0.0
    %v135 = vadd.f32 %v43, 0.0
    %v136 = vrot.slane %v134, 4
    %v137 = vadd.f32 %v134, %v136
    %v138 = vrot.slane %v137, 2
    %v139 = vadd.f32 %v137, %v138
    %v140 = vrot.slane %v139, 1
    %v141 = vadd.f32 %v139, %v140
    %v142 = vrot.slane %v135, 4
    %v143 = vadd.f32 %v135, %v142
    %v144 = vrot.slane %v143, 2
    %v145 = vadd.f32 %v143, %v144
    %v146 = vrot.slane %v145, 1
    %v147 = vadd.f32 %v145, %v146
    %v150 = vsel %vm88, %v147, %v141
    %s152 = scalar_lea.vmem [#allocation7], 6
    %153 = vst [vmem:[%s152] sm:$0x3] %v150
    // Predicated region
    $region18: #{tpu_custom_call.1} parent=1 // pred_check
      _
    $region19: #{tpu_custom_call.1} parent=1 // pred_check_branch
      %155 = sbr.rel (0) target = $region21
    $region20: #{tpu_custom_call.1} parent=1 // pred_region
      %s157 = ssub.s32 128, 128
      %158 = vsyncadd [#allocation4], %s157
      %s159 = sshll.u32 [#allocation7], 4
      %s160 = int_to_ptr.vmem [resolvable:$true] %s159
      %165 = dma.vmem_to_hbm [thread:$0]  %s160, 128, %s2, [#allocation4], 32, 32, 2
    $region21: #{tpu_custom_call.1} parent=1 // pred_fallthru
      _
    // Predicated region
    $region22: #{tpu_custom_call.1} parent=1 // pred_check
      _
    $region23: #{tpu_custom_call.1} parent=1 // pred_check_branch
      %167 = sbr.rel (0) target = $region25
    $region24: #{tpu_custom_call.1} parent=1 // pred_region
      %168 = dma.done [#allocation4], 128
    $region25: #{tpu_custom_call.1} parent=1 // pred_fallthru
      _
    %169 = vsyncpa [#allocation3], 1
    %170 = vsyncpa [#allocation6], 1
    %171 = vsyncpa [#allocation4], 1

</llo_original>
